<compile_context>
chip_gen: v5e
topology: v5e:2x2
jax: 0.10.0
libtpu: 0.0.40
codegen_flags: <defaults>
</compile_context>

<pallas_src>
import functools

import jax
import jax.numpy as jnp
from jax.experimental import pallas as pl
from jax.experimental.pallas import tpu as pltpu


def _round_up(x: int, m: int) -> int:
    return ((x + m - 1) // m) * m


def feedforward_kernel(seed_ref, x_ref, w1_ref, b1_ref, w2_ref, b2_ref,
                       o_ref, acc_ref, *, dropout_rate: float, train: bool):
    k = pl.program_id(1)

    @pl.when(k == 0)
    def _():
        acc_ref[...] = jnp.zeros_like(acc_ref)

    # First matmul (bf16 operands, f32 accumulation on MXU) + bias + ReLU (f32 epilogue).
    h = jnp.dot(x_ref[...], w1_ref[...], preferred_element_type=jnp.float32)   # (TM, TH)
    h = jnp.maximum(h + b1_ref[...], 0.0)

    # Second matmul: accumulate partial products over hidden chunks.
    acc_ref[...] += jnp.dot(h.astype(w2_ref.dtype), w2_ref[...],
                            preferred_element_type=jnp.float32)                # (TM, E)

    @pl.when(k == pl.num_programs(1) - 1)
    def _():
        y = acc_ref[...] + b2_ref[...]                                         # add b2 once
        if train and dropout_rate >= 1.0:
            y = jnp.zeros_like(y)
        elif train and dropout_rate > 0.0:
            # Per-row-tile seed so masks are independent across grid tiles.
            pltpu.prng_seed(seed_ref[0] + pl.program_id(0))
            bits = pltpu.bitcast(pltpu.prng_random_bits(y.shape), jnp.uint32)
            thresh = jnp.uint32(min(int(round(dropout_rate * (2 ** 32))), 2 ** 32 - 1))
            keep = bits >= thresh                                              # integer compare
            scale = jnp.float32(1.0 / (1.0 - dropout_rate))
            y = jnp.where(keep, y * scale, jnp.zeros_like(y))
        o_ref[...] = y.astype(o_ref.dtype)


def feed_forward(x, w1, b1, w2, b2, *, dropout_rate=0.2, train=False, seed=0):
    """x: (B, T, E). w1: (E, 4E), b1: (1, 4E), w2: (4E, E), b2: (1, E). Returns (B, T, E)."""
    B, T, E = x.shape
    H = w1.shape[1]
    N = B * T

    # ---- lane-dense padding (E, H -> multiples of 128) ----------------------
    E_pad = _round_up(max(E, 128), 128)
    H_pad = _round_up(max(H, 128), 128)

    # bf16 matmul operands (cast hoisted out of the kernel); f32 biases for the epilogue.
    x2d = jnp.pad(x.reshape(N, E), ((0, 0), (0, E_pad - E))).astype(jnp.bfloat16)
    w1p = jnp.pad(w1, ((0, E_pad - E), (0, H_pad - H))).astype(jnp.bfloat16)
    w2p = jnp.pad(w2, ((0, H_pad - H), (0, E_pad - E))).astype(jnp.bfloat16)
    b1p = jnp.pad(b1.astype(jnp.float32), ((0, 0), (0, H_pad - H)))
    b2p = jnp.pad(b2.astype(jnp.float32), ((0, 0), (0, E_pad - E)))

    # ---- row tile: big for large N (roofline), >=2 tiles when possible (v7x 2 TCs) ----
    if N >= 2048:
        TM = 512
    elif N >= 512:
        TM = 256
    elif N >= 16:
        TM = _round_up((N + 1) // 2, 8)        # at least 2 row tiles
    else:
        TM = _round_up(max(N, 1), 8)
    N_pad = _round_up(N, TM)
    if N_pad != N:
        x2d = jnp.pad(x2d, ((0, N_pad - N), (0, 0)))

    # ---- generation-aware VMEM budget ---------------------------------------
    try:
        vmem_cap = int(pltpu.get_tpu_info().vmem_capacity_bytes)
    except Exception:
        vmem_cap = 64 * 1024 * 1024            # conservative (v7x per-TC) fallback
    budget = int(vmem_cap * 0.55)              # ~35 MiB on v7x, ~70 MiB on v5e/v6e

    def _vmem_bytes(tm, th):
        return (2 * tm * E_pad * 2             # x tiles (bf16, double buffered)
                + 2 * tm * E_pad * 4           # out tiles (f32)
                + 2 * E_pad * th * 2           # w1 tiles (bf16)
                + 2 * th * E_pad * 2           # w2 tiles (bf16)
                + 2 * 8 * th * 4               # b1 tiles (sublane-padded to 8 rows, f32)
                + 2 * 8 * E_pad * 4            # b2 tiles (f32, constant index)
                + tm * E_pad * 4)              # f32 accumulator scratch

    # Prefer fully-resident weights (TH = H_pad -> reduction axis collapses to 1);
    # otherwise largest 128-multiple hidden chunk that fits the budget.
    th_cands = [H_pad] + [c for c in (2048, 1024, 512, 256, 128)
                          if c < H_pad and H_pad % c == 0]
    TH = None
    for cand in th_cands:
        if _vmem_bytes(TM, cand) <= budget:
            TH = cand
            break
    if TH is None:
        TH = 128
    grid = (N_pad // TM, H_pad // TH)

    vmem_bytes = _vmem_bytes(TM, TH)
    vmem_limit = int(min(max(vmem_bytes * 5 // 4, 16 * 1024 * 1024),
                         int(vmem_cap * 0.9)))

    # ---- cost hint (weights re-streamed per row tile unless resident) -------
    weight_bytes = (w1p.size + w2p.size) * 2 + (b1p.size + b2p.size) * 4
    weight_fetches = 1 if grid[1] == 1 else grid[0]
    cost = pl.CostEstimate(
        flops=2 * 2 * N_pad * E_pad * H_pad,   # two matmuls
        transcendentals=0,
        bytes_accessed=(x2d.size * 2 + N_pad * E_pad * 4
                        + weight_fetches * weight_bytes))

    kernel = functools.partial(feedforward_kernel,
                               dropout_rate=float(dropout_rate),
                               train=bool(train))

    grid_spec = pltpu.PrefetchScalarGridSpec(
        num_scalar_prefetch=1,                 # seed -> SMEM
        grid=grid,
        in_specs=[
            pl.BlockSpec((TM, E_pad), lambda i, k, seed: (i, 0)),   # x   (bf16)
            pl.BlockSpec((E_pad, TH), lambda i, k, seed: (0, k)),   # w1  (bf16)
            pl.BlockSpec((1, TH),     lambda i, k, seed: (0, k)),   # b1  (f32)
            pl.BlockSpec((TH, E_pad), lambda i, k, seed: (k, 0)),   # w2  (bf16)
            pl.BlockSpec((1, E_pad),  lambda i, k, seed: (0, 0)),   # b2  (f32, resident)
        ],
        out_specs=pl.BlockSpec((TM, E_pad), lambda i, k, seed: (i, 0)),
        scratch_shapes=[pltpu.VMEM((TM, E_pad), jnp.float32)],      # accumulator
    )

    out2d = pl.pallas_call(
        kernel,
        out_shape=jax.ShapeDtypeStruct((N_pad, E_pad), jnp.float32),
        grid_spec=grid_spec,
        compiler_params=pltpu.CompilerParams(
            dimension_semantics=("parallel", "arbitrary"),
            vmem_limit_bytes=vmem_limit),
        cost_estimate=cost,
    )(jnp.array([seed], dtype=jnp.int32), x2d, w1p, b1p, w2p, b2p)

    return out2d[:N, :E].reshape(B, T, E).astype(x.dtype)


if __name__ == "__main__":
    # Small shapes consistent with the transformer FeedForward block.
    embedding_dimensions = 32
    B, T, E = 2, 8, embedding_dimensions
    H = 4 * E

    key = jax.random.PRNGKey(0)
    kx, kw1, kb1, kw2, kb2 = jax.random.split(key, 5)

    # Deterministic synthetic parameters (nn.Linear shapes, stored transposed).
    scale1 = 1.0 / (E ** 0.5)
    scale2 = 1.0 / (H ** 0.5)
    w1 = jax.random.normal(kw1, (E, H), dtype=jnp.float32) * scale1
    b1 = jax.random.normal(kb1, (1, H), dtype=jnp.float32) * scale1
    w2 = jax.random.normal(kw2, (H, E), dtype=jnp.float32) * scale2
    b2 = jax.random.normal(kb2, (1, E), dtype=jnp.float32) * scale2

    x = jax.random.normal(kx, (B, T, E), dtype=jnp.float32)

    # Eval-mode forward (dropout = identity), fused + tiled Pallas kernel (bf16 matmuls).
    out = feed_forward(x, w1, b1, w2, b2, dropout_rate=0.2, train=False)
    out = jax.block_until_ready(out)

    # Pure-JAX f32 reference (eval mode); loose tolerance because the kernel's matmul
    # operands are bf16 (f32 accumulation).
    ref = (jnp.maximum(x.reshape(-1, E) @ w1 + b1, 0.0) @ w2 + b2).reshape(B, T, E)
    assert out.shape == (B, T, E)
    assert jnp.allclose(out, ref, atol=5e-2, rtol=5e-2)

    # Training-mode (in-kernel hardware-PRNG dropout) needs a real TPU backend;
    # the CPU interpreter has no lowering for prng_seed/prng_random_bits.
    if jax.devices()[0].platform == "tpu":
        out_tr = jax.block_until_ready(
            feed_forward(x, w1, b1, w2, b2, dropout_rate=0.2, train=True, seed=123))
        assert out_tr.shape == (B, T, E)
        assert bool(jnp.all(jnp.isfinite(out_tr)))

    print("KERNEL_OK")
</pallas_src>

<mosaic_0001>
module attributes {stable_mosaic.version = 11 : i64} {
  func.func @feedforward_kernel(%arg0: i32, %arg1: i32, %arg2: memref<1xi32, #tpu.memory_space<smem>>, %arg3: memref<8x128xbf16, #tpu.memory_space<vmem>>, %arg4: memref<128x128xbf16, #tpu.memory_space<vmem>>, %arg5: memref<1x128xf32, #tpu.memory_space<vmem>>, %arg6: memref<128x128xbf16, #tpu.memory_space<vmem>>, %arg7: memref<1x128xf32, #tpu.memory_space<vmem>>, %arg8: memref<8x128xf32, #tpu.memory_space<vmem>>, %arg9: memref<8x128xf32, #tpu.memory_space<vmem>>) attributes {dimension_semantics = [#tpu.dimension_semantics<parallel>, #tpu.dimension_semantics<arbitrary>], iteration_bounds = array<i64: 2, 1>, scalar_prefetch = 1 : i64, scratch_operands = 1 : i64, tpu.core_type = #tpu.core_type<tc>, window_params = [{transform_indices = @transform_0, window_bounds = array<i64: 8, 128>}, {transform_indices = @transform_1, window_bounds = array<i64: 128, 128>}, {transform_indices = @transform_2, window_bounds = array<i64: 1, 128>}, {transform_indices = @transform_3, window_bounds = array<i64: 128, 128>}, {pipeline_mode = #tpu.pipeline_mode<synchronous>, transform_indices = @transform_4, window_bounds = array<i64: 1, 128>}, {transform_indices = @transform_5, window_bounds = array<i64: 8, 128>}]} {
    %c0_i32 = arith.constant 0 : i32
    %0 = arith.cmpi eq, %arg1, %c0_i32 : i32
    %1 = arith.extui %0 : i1 to i32
    %c0_i32_0 = arith.constant 0 : i32
    %2 = arith.cmpi ne, %1, %c0_i32_0 : i32
    scf.if %2 {
      %cst_16 = arith.constant 0.000000e+00 : f32
      %20 = vector.broadcast %cst_16 : f32 to vector<8x128xf32>
      %c0_17 = arith.constant 0 : index
      %c0_18 = arith.constant 0 : index
      %21 = vector.load %arg9[%c0_17, %c0_18] : memref<8x128xf32, #tpu.memory_space<vmem>>, vector<8x128xf32>
      tpu.vector_store %arg9[%c0_17, %c0_18], %20 {strides = array<i32>} : memref<8x128xf32, #tpu.memory_space<vmem>>, vector<8x128xf32>,
    } else {
    }
    %c0 = arith.constant 0 : index
    %c0_1 = arith.constant 0 : index
    %3 = vector.load %arg3[%c0, %c0_1] : memref<8x128xbf16, #tpu.memory_space<vmem>>, vector<8x128xbf16>
    %c0_2 = arith.constant 0 : index
    %c0_3 = arith.constant 0 : index
    %4 = vector.load %arg4[%c0_2, %c0_3] : memref<128x128xbf16, #tpu.memory_space<vmem>>, vector<128x128xbf16>
    %cst = arith.constant dense<0.000000e+00> : vector<8x128xf32>
    %5 = tpu.matmul %3, %4, %cst {dimension_numbers = #tpu.dot_dimension_numbers<[1], [0], [0], [1], [0, 0, 1, 1], [], []>} : vector<8x128xbf16>, vector<128x128xbf16>, vector<8x128xf32> -> vector<8x128xf32>
    %c0_4 = arith.constant 0 : index
    %c0_5 = arith.constant 0 : index
    %6 = vector.load %arg5[%c0_4, %c0_5] : memref<1x128xf32, #tpu.memory_space<vmem>>, vector<1x128xf32>
    %7 = vector.broadcast %6 : vector<1x128xf32> to vector<8x128xf32>
    %8 = arith.addf %5, %7 : vector<8x128xf32>
    %cst_6 = arith.constant 0.000000e+00 : f32
    %9 = vector.broadcast %cst_6 : f32 to vector<8x128xf32>
    %10 = arith.maximumf %8, %9 : vector<8x128xf32>
    %c0_7 = arith.constant 0 : index
    %c0_8 = arith.constant 0 : index
    %11 = vector.load %arg9[%c0_7, %c0_8] : memref<8x128xf32, #tpu.memory_space<vmem>>, vector<8x128xf32>
    %12 = arith.truncf %10 : vector<8x128xf32> to vector<8x128xbf16>
    %c0_9 = arith.constant 0 : index
    %c0_10 = arith.constant 0 : index
    %13 = vector.load %arg6[%c0_9, %c0_10] : memref<128x128xbf16, #tpu.memory_space<vmem>>, vector<128x128xbf16>
    %cst_11 = arith.constant dense<0.000000e+00> : vector<8x128xf32>
    %14 = tpu.matmul %12, %13, %cst_11 {dimension_numbers = #tpu.dot_dimension_numbers<[1], [0], [0], [1], [0, 0, 1, 1], [], []>} : vector<8x128xbf16>, vector<128x128xbf16>, vector<8x128xf32> -> vector<8x128xf32>
    %15 = arith.addf %11, %14 : vector<8x128xf32>
    %c0_12 = arith.constant 0 : index
    %c0_13 = arith.constant 0 : index
    %16 = vector.load %arg9[%c0_12, %c0_13] : memref<8x128xf32, #tpu.memory_space<vmem>>, vector<8x128xf32>
    tpu.vector_store %arg9[%c0_12, %c0_13], %15 {strides = array<i32>} : memref<8x128xf32, #tpu.memory_space<vmem>>, vector<8x128xf32>,
    %c0_i32_14 = arith.constant 0 : i32
    %17 = arith.cmpi eq, %arg1, %c0_i32_14 : i32
    %18 = arith.extui %17 : i1 to i32
    %c0_i32_15 = arith.constant 0 : i32
    %19 = arith.cmpi ne, %18, %c0_i32_15 : i32
    scf.if %19 {
      %c0_16 = arith.constant 0 : index
      %c0_17 = arith.constant 0 : index
      %20 = vector.load %arg9[%c0_16, %c0_17] : memref<8x128xf32, #tpu.memory_space<vmem>>, vector<8x128xf32>
      %c0_18 = arith.constant 0 : index
      %c0_19 = arith.constant 0 : index
      %21 = vector.load %arg7[%c0_18, %c0_19] : memref<1x128xf32, #tpu.memory_space<vmem>>, vector<1x128xf32>
      %22 = vector.broadcast %21 : vector<1x128xf32> to vector<8x128xf32>
      %23 = arith.addf %20, %22 : vector<8x128xf32>
      %c0_20 = arith.constant 0 : index
      %c0_21 = arith.constant 0 : index
      %24 = vector.load %arg8[%c0_20, %c0_21] : memref<8x128xf32, #tpu.memory_space<vmem>>, vector<8x128xf32>
      tpu.vector_store %arg8[%c0_20, %c0_21], %23 {strides = array<i32>} : memref<8x128xf32, #tpu.memory_space<vmem>>, vector<8x128xf32>,
    } else {
    }
    return
  }
  func.func @transform_0(%arg0: i32, %arg1: i32, %arg2: memref<1xi32, #tpu.memory_space<smem>>) -> (i32, i32) {
    %c0_i32 = arith.constant 0 : i32
    %c0_i32_0 = arith.constant 0 : i32
    return %arg0, %c0_i32 : i32, i32
  }
  func.func @transform_1(%arg0: i32, %arg1: i32, %arg2: memref<1xi32, #tpu.memory_space<smem>>) -> (i32, i32) {
    %c0_i32 = arith.constant 0 : i32
    %c0_i32_0 = arith.constant 0 : i32
    return %c0_i32, %arg1 : i32, i32
  }
  func.func @transform_2(%arg0: i32, %arg1: i32, %arg2: memref<1xi32, #tpu.memory_space<smem>>) -> (i32, i32) {
    %c0_i32 = arith.constant 0 : i32
    %c0_i32_0 = arith.constant 0 : i32
    return %c0_i32, %arg1 : i32, i32
  }
  func.func @transform_3(%arg0: i32, %arg1: i32, %arg2: memref<1xi32, #tpu.memory_space<smem>>) -> (i32, i32) {
    %c0_i32 = arith.constant 0 : i32
    %c0_i32_0 = arith.constant 0 : i32
    return %arg1, %c0_i32 : i32, i32
  }
  func.func @transform_4(%arg0: i32, %arg1: i32, %arg2: memref<1xi32, #tpu.memory_space<smem>>) -> (i32, i32) {
    %c0_i32 = arith.constant 0 : i32
    %c0_i32_0 = arith.constant 0 : i32
    %c0_i32_1 = arith.constant 0 : i32
    return %c0_i32, %c0_i32_0 : i32, i32
  }
  func.func @transform_5(%arg0: i32, %arg1: i32, %arg2: memref<1xi32, #tpu.memory_space<smem>>) -> (i32, i32) {
    %c0_i32 = arith.constant 0 : i32
    %c0_i32_0 = arith.constant 0 : i32
    return %arg0, %c0_i32 : i32, i32
  }
}

</mosaic_0001>

<llo_original>
// kernel: tpu_custom_call.1
$region0: #{tpu_custom_call.1}
  #allocation0 [shape = 'u32[]', space=smem, size = 0x4, offset = 0x4, fixed_abs, tag = 'smem constant byte address 0x4 - core index']
  #allocation1 [shape = 'u32[72,128]{1,0:T(1,128)}', space=vmem, size = 0x9000, scoped, tag = 'internal scratch']
  #allocation2 [shape = 'f32[8,128]{1,0:T(8,128)}', space=vmem, size = 0x1000, scoped, tag = 'scratch operand']
  #allocation3 [shape = 's32[1]{0}', space=sflag, size = 0x4, scoped, tag = 'scoped memory for tpu_custom_call.1']
  #allocation4 [shape = 's32[1]{0:T(128)S(6)}', space=smem, size = 0x200, scoped, tag = 'prefetched SMEM operand 0']
  %s0 = inlined_call_operand.<no memory space> [shape: s32[1], index: 0, kind: input, shape index: {}]
  %s1 = inlined_call_operand.hbm [shape: bf16[16,128], index: 1, kind: input, shape index: {}]
  %s2 = inlined_call_operand.hbm [shape: bf16[128,128], index: 2, kind: input, shape index: {}]
  %s3 = inlined_call_operand.vmem [shape: f32[1,128], index: 3, kind: input, shape index: {}]
  %s4 = inlined_call_operand.hbm [shape: bf16[128,128], index: 4, kind: input, shape index: {}]
  %s5 = inlined_call_operand.vmem [shape: f32[1,128], index: 5, kind: input, shape index: {}]
  %s6 = inlined_call_operand.hbm [shape: f32[16,128], index: 6, kind: output, shape index: {}]
  %s7 = sld [smem:[#allocation0]]
  $region73: #{tpu_custom_call.1} parent=0
    _
  %s9 = ssub.s32 1, %s7
  %s10 = scalar_select 0, %s9, %s7
  %11 = sst [smem:[#allocation4]] %s0
  $region1: #{tpu_custom_call.1} parent=0
    #allocation5 [shape = 'u8[4096]{0}', space=vmem, size = 0x1000, scoped, tag = 'input window, operand 1']
    #allocation6 [shape = 's32[2]{0}', space=sflag, size = 0x8, scoped, tag = 'scoped memory for tpu_custom_call.1']
    #allocation7 [shape = 's32[2]{0}', space=sflag, size = 0x8, scoped, tag = 'scoped memory for tpu_custom_call.1']
    #allocation8 [shape = 'u8[32768]{0}', space=vmem, size = 0x8000, scoped, tag = 'input window, operand 2, single buffered']
    #allocation9 [shape = 's32[1]{0}', space=sflag, size = 0x4, scoped, tag = 'scoped memory for tpu_custom_call.1']
    #allocation10 [shape = 'u8[32768]{0}', space=vmem, size = 0x8000, scoped, tag = 'input window, operand 4, single buffered']
    #allocation11 [shape = 'u8[8192]{0}', space=vmem, size = 0x2000, scoped, tag = 'output window, operand 0']
    %12 = vsyncpa [#allocation6], 0
    %s13 = scalar_lea.sflag [#allocation6], 1
    %14 = vsyncpa %s13, 0
    %15 = vsyncpa [#allocation9], 0
    %16 = vsyncpa [#allocation7], 0
    %s17 = scalar_lea.sflag [#allocation7], 1
    %18 = vsyncpa %s17, 0
    loop: start=0, step=1, limit=4
    $region2: #{tpu_custom_call.1} parent=1 // loop_pre_header
      _
    $region3: #{tpu_custom_call.1} parent=1 // loop_header
      %s20 = sphi 0, %s24
      %p21 = scmp.ge.s32.totalorder %s20, 4
      %s27 = sphi 0, %s39
      %s28 = sphi 0, %s35
      %s29 = sphi 0, %s27
      %s30 = sphi 0, %s28
      %s31 = sphi 0, %s29
      %s32 = sphi 0, %s30
      %s42 = sphi 0, %s44
      %s45 = sphi 0, %s42
      %s46 = sphi 0, %s45
      %s62 = sphi 0, %s46
      %s68 = sphi 0, %s70
      %s71 = sphi 0, %s68
      %s72 = sphi 0, %s71
      %s88 = sphi 0, %s72
      %s94 = sphi 0, %s96
      %s97 = sphi 0, %s94
      %s98 = sphi 0, %s97
      %s114 = sphi 0, %s98
      %s120 = sphi 0, %s122
      %s123 = sphi 0, %s120
      %s124 = sphi 0, %s123
      %s140 = sphi 0, %s124
      %s144 = sphi 0, %s144
      %s146 = sphi 0, %s144
      %s147 = sphi 0, %s146
      %s161 = sphi 0, %s147
      %s167 = sphi 0, %s169
      %s170 = sphi 0, %s167
      %s171 = sphi 0, %s170
      %s187 = sphi 0, %s171
    $region4: #{tpu_custom_call.1} parent=1 // loop_header_branch
      %23 = sbr.rel (%p21) target = $region8
    $region5: #{tpu_custom_call.1} parent=1 // loop_body
      %s25 = ssub.s32 %s20, 1
      %s26 = ssub.s32 %s20, 2
      %s33 = sadd.s32 1, %s28
      %p34 = scmp.ge.s32.totalorder %s33, 1
      %s35 = scalar_select %p34, 0, %s33
      %s36 = sadd.s32 1, %s27
      %s37 = scalar_select %p34, %s36, %s27
      %p38 = scmp.ge.s32.totalorder %s37, 2
      %s39 = scalar_select %p38, 0, %s37
      %s40 = ssub.s32 %s27, %s39
      %p41 = scmp.eq.s32.totalorder %s40, 0
      %s43 = sadd.s32 %s42, 1
      %s44 = scalar_select %p41, %s42, %s43
      %p47 = pneg %p41
      %p48 = scmp.eq.s32.totalorder %s20, 1
      %p49 = por %p47, %p48
      %p50 = scmp.ne.s32.totalorder %s42, %s45
      %p51 = scmp.eq.s32.totalorder %s20, 0
      %p52 = por %p50, %p51
      %p53 = scmp.ne.s32.totalorder %s42, %s45
      %p54 = scmp.eq.s32.totalorder %s25, 1
      %p55 = por %p53, %p54
      %p56 = scmp.ne.s32.totalorder %s45, %s46
      %p57 = scmp.eq.s32.totalorder %s25, 0
      %p58 = por %p56, %p57
      %p59 = scmp.ne.s32.totalorder %s45, %s46
      %p60 = scmp.eq.s32.totalorder %s26, 1
      %p61 = por %p59, %p60
      %p63 = scmp.ne.s32.totalorder %s46, %s62
      %p64 = scmp.eq.s32.totalorder %s26, 0
      %p65 = por %p63, %p64
      %s66 = ssub.s32 %s28, %s35
      %p67 = scmp.eq.s32.totalorder %s66, 0
      %s69 = sadd.s32 %s68, 1
      %s70 = scalar_select %p67, %s68, %s69
      %p73 = pneg %p67
      %p74 = scmp.eq.s32.totalorder %s20, 1
      %p75 = por %p73, %p74
      %p76 = scmp.ne.s32.totalorder %s68, %s71
      %p77 = scmp.eq.s32.totalorder %s20, 0
      %p78 = por %p76, %p77
      %p79 = scmp.ne.s32.totalorder %s68, %s71
      %p80 = scmp.eq.s32.totalorder %s25, 1
      %p81 = por %p79, %p80
      %p82 = scmp.ne.s32.totalorder %s71, %s72
      %p83 = scmp.eq.s32.totalorder %s25, 0
      %p84 = por %p82, %p83
      %p85 = scmp.ne.s32.totalorder %s71, %s72
      %p86 = scmp.eq.s32.totalorder %s26, 1
      %p87 = por %p85, %p86
      %p89 = scmp.ne.s32.totalorder %s72, %s88
      %p90 = scmp.eq.s32.totalorder %s26, 0
      %p91 = por %p89, %p90
      %s92 = ssub.s32 %s28, %s35
      %p93 = scmp.eq.s32.totalorder %s92, 0
      %s95 = sadd.s32 %s94, 1
      %s96 = scalar_select %p93, %s94, %s95
      %p99 = pneg %p93
      %p100 = scmp.eq.s32.totalorder %s20, 1
      %p101 = por %p99, %p100
      %p102 = scmp.ne.s32.totalorder %s94, %s97
      %p103 = scmp.eq.s32.totalorder %s20, 0
      %p104 = por %p102, %p103
      %p105 = scmp.ne.s32.totalorder %s94, %s97
      %p106 = scmp.eq.s32.totalorder %s25, 1
      %p107 = por %p105, %p106
      %p108 = scmp.ne.s32.totalorder %s97, %s98
      %p109 = scmp.eq.s32.totalorder %s25, 0
      %p110 = por %p108, %p109
      %p111 = scmp.ne.s32.totalorder %s97, %s98
      %p112 = scmp.eq.s32.totalorder %s26, 1
      %p113 = por %p111, %p112
      %p115 = scmp.ne.s32.totalorder %s98, %s114
      %p116 = scmp.eq.s32.totalorder %s26, 0
      %p117 = por %p115, %p116
      %s118 = ssub.s32 %s28, %s35
      %p119 = scmp.eq.s32.totalorder %s118, 0
      %s121 = sadd.s32 %s120, 1
      %s122 = scalar_select %p119, %s120, %s121
      %p125 = pneg %p119
      %p126 = scmp.eq.s32.totalorder %s20, 1
      %p127 = por %p125, %p126
      %p128 = scmp.ne.s32.totalorder %s120, %s123
      %p129 = scmp.eq.s32.totalorder %s20, 0
      %p130 = por %p128, %p129
      %p131 = scmp.ne.s32.totalorder %s120, %s123
      %p132 = scmp.eq.s32.totalorder %s25, 1
      %p133 = por %p131, %p132
      %p134 = scmp.ne.s32.totalorder %s123, %s124
      %p135 = scmp.eq.s32.totalorder %s25, 0
      %p136 = por %p134, %p135
      %p137 = scmp.ne.s32.totalorder %s123, %s124
      %p138 = scmp.eq.s32.totalorder %s26, 1
      %p139 = por %p137, %p138
      %p141 = scmp.ne.s32.totalorder %s124, %s140
      %p142 = scmp.eq.s32.totalorder %s26, 0
      %p143 = por %p141, %p142
      %s145 = sadd.s32 %s144, 1
      %p148 = scmp.eq.s32.totalorder %s20, 1
      %p149 = scmp.ne.s32.totalorder %s144, %s146
      %p150 = scmp.eq.s32.totalorder %s20, 0
      %p151 = por %p149, %p150
      %p152 = scmp.ne.s32.totalorder %s144, %s146
      %p153 = scmp.eq.s32.totalorder %s25, 1
      %p154 = por %p152, %p153
      %p155 = scmp.ne.s32.totalorder %s146, %s147
      %p156 = scmp.eq.s32.totalorder %s25, 0
      %p157 = por %p155, %p156
      %p158 = scmp.ne.s32.totalorder %s146, %s147
      %p159 = scmp.eq.s32.totalorder %s26, 1
      %p160 = por %p158, %p159
      %p162 = scmp.ne.s32.totalorder %s147, %s161
      %p163 = scmp.eq.s32.totalorder %s26, 0
      %p164 = por %p162, %p163
      %s165 = ssub.s32 %s27, %s39
      %p166 = scmp.eq.s32.totalorder %s165, 0
      %s168 = sadd.s32 %s167, 1
      %s169 = scalar_select %p166, %s167, %s168
      %p172 = pneg %p166
      %p173 = scmp.eq.s32.totalorder %s20, 1
      %p174 = por %p172, %p173
      %p175 = scmp.ne.s32.totalorder %s167, %s170
      %p176 = scmp.eq.s32.totalorder %s20, 0
      %p177 = por %p175, %p176
      %p178 = scmp.ne.s32.totalorder %s167, %s170
      %p179 = scmp.eq.s32.totalorder %s25, 1
      %p180 = por %p178, %p179
      %p181 = scmp.ne.s32.totalorder %s170, %s171
      %p182 = scmp.eq.s32.totalorder %s25, 0
      %p183 = por %p181, %p182
      %p184 = scmp.ne.s32.totalorder %s170, %s171
      %p185 = scmp.eq.s32.totalorder %s26, 1
      %p186 = por %p184, %p185
      %p188 = scmp.ne.s32.totalorder %s171, %s187
      %p189 = scmp.eq.s32.totalorder %s26, 0
      %p190 = por %p188, %p189
      %p191 = scmp.le.s32.totalorder 1, %s20
      %p192 = scmp.lt.s32.totalorder %s20, 3
      %p193 = pnand %p191, %p192
      %p194 = pneg %p193
      // Predicated region
      $region9: #{tpu_custom_call.1} parent=5 // pred_check
        _
      $region10: #{tpu_custom_call.1} parent=5 // pred_check_branch
        %196 = sbr.rel (%p193) target = $region12
      $region11: #{tpu_custom_call.1} parent=5 // pred_region
        %s197 = ssub.s32 %s20, 1
        // Predicated region
        $region13: #{tpu_custom_call.1} parent=11 // pred_check
          %p198 = pneg %p84
        $region14: #{tpu_custom_call.1} parent=11 // pred_check_branch
          %200 = sbr.rel (%p198) target = $region16
        $region15: #{tpu_custom_call.1} parent=11 // pred_region
          %202 = vsyncadd [#allocation9], 0
          %s203 = smul.addr %s30, 4
          %s204 = scalar_lea.hbm %s2, %s203
          %s205 = sshll.u32 %s204, 4
          %s206 = int_to_ptr.hbm [resolvable:$true] %s205
          %s207 = sshll.u32 [#allocation8], 4
          %s208 = int_to_ptr.vmem [resolvable:$true] %s207
          %213 = dma.hbm_to_vmem [thread:$0]  %s206, 1024, %s208, [#allocation9], 64, 64, 4
        $region16: #{tpu_custom_call.1} parent=11 // pred_fallthru
          _
        // Predicated region
        $region17: #{tpu_custom_call.1} parent=11 // pred_check
          %p214 = pneg %p110
        $region18: #{tpu_custom_call.1} parent=11 // pred_check_branch
          %216 = sbr.rel (%p214) target = $region20
        $region19: #{tpu_custom_call.1} parent=11 // pred_region
          %p217 = scmp.lt.s32.totalorder %s30, 0
          %s218 = scalar_select %p217, %s30, 0
          %s219 = scalar_lea.vmem %s3, %s218
        $region20: #{tpu_custom_call.1} parent=11 // pred_fallthru
          _
        // Predicated region
        $region21: #{tpu_custom_call.1} parent=11 // pred_check
          %p220 = pneg %p136
        $region22: #{tpu_custom_call.1} parent=11 // pred_check_branch
          %222 = sbr.rel (%p220) target = $region24
        $region23: #{tpu_custom_call.1} parent=11 // pred_region
          %s223 = smul.u32 16, %s30
          %225 = vsyncadd [#allocation9], 0
          %s226 = smul.addr %s223, 4
          %s227 = scalar_lea.hbm %s4, %s226
          %s228 = sshll.u32 %s227, 4
          %s229 = int_to_ptr.hbm [resolvable:$true] %s228
          %s230 = sshll.u32 [#allocation10], 4
          %s231 = int_to_ptr.vmem [resolvable:$true] %s230
          %236 = dma.hbm_to_vmem [thread:$0]  %s229, 1024, %s231, [#allocation9], 64, 64, 4
        $region24: #{tpu_custom_call.1} parent=11 // pred_fallthru
          _
        // Predicated region
        $region25: #{tpu_custom_call.1} parent=11 // pred_check
          %p237 = pneg %p157
        $region26: #{tpu_custom_call.1} parent=11 // pred_check_branch
          %239 = sbr.rel (%p237) target = $region28
        $region27: #{tpu_custom_call.1} parent=11 // pred_region
          _
        $region28: #{tpu_custom_call.1} parent=11 // pred_fallthru
          _
      $region12: #{tpu_custom_call.1} parent=5 // pred_fallthru
        _
      %p240 = scmp.lt.s32.totalorder %s20, 2
      // Predicated region
      $region29: #{tpu_custom_call.1} parent=5 // pred_check
        %p241 = pneg %p240
      $region30: #{tpu_custom_call.1} parent=5 // pred_check_branch
        %243 = sbr.rel (%p241) target = $region32
      $region31: #{tpu_custom_call.1} parent=5 // pred_region
        // Predicated region
        $region33: #{tpu_custom_call.1} parent=31 // pred_check
          %p244 = pneg %p52
        $region34: #{tpu_custom_call.1} parent=31 // pred_check_branch
          %246 = sbr.rel (%p244) target = $region36
        $region35: #{tpu_custom_call.1} parent=31 // pred_region
          %s247 = sand.u32 %s42, 1
          %s248 = scalar_lea.sflag [#allocation6], %s247
          %s249 = sand.u32 %s42, 1
          %s250 = smul.addr %s249, 4
          %s251 = scalar_lea.vmem [#allocation5], %s250
          %253 = vsyncadd %s248, 0
          %s254 = smul.addr %s27, 4
          %s255 = scalar_lea.hbm %s1, %s254
          %s257 = sshll.u32 %s255, 4
          %s258 = int_to_ptr.hbm [resolvable:$true] %s257
          %s259 = sshll.u32 %s251, 4
          %s260 = int_to_ptr.vmem [resolvable:$true] %s259
          %262 = dma.hbm_to_vmem [thread:$0]  %s258, 64, %s260, %s248
        $region36: #{tpu_custom_call.1} parent=31 // pred_fallthru
          _
      $region32: #{tpu_custom_call.1} parent=5 // pred_fallthru
        _
      %p263 = scmp.le.s32.totalorder 1, %s20
      %p264 = scmp.lt.s32.totalorder %s20, 3
      %p265 = pnand %p263, %p264
      %p266 = pneg %p265
      // Predicated region
      $region37: #{tpu_custom_call.1} parent=5 // pred_check
        _
      $region38: #{tpu_custom_call.1} parent=5 // pred_check_branch
        %268 = sbr.rel (%p265) target = $region40
      $region39: #{tpu_custom_call.1} parent=5 // pred_region
        %s269 = ssub.s32 %s20, 1
        %s270 = sand.u32 %s45, 1
        %s271 = scalar_lea.sflag [#allocation6], %s270
        %s272 = sand.u32 %s45, 1
        %s273 = smul.addr %s272, 4
        %s274 = scalar_lea.vmem [#allocation5], %s273
        // Predicated region
        $region41: #{tpu_custom_call.1} parent=39 // pred_check
          %p275 = pneg %p58
        $region42: #{tpu_custom_call.1} parent=39 // pred_check_branch
          %277 = sbr.rel (%p275) target = $region44
        $region43: #{tpu_custom_call.1} parent=39 // pred_region
          %279 = dma.done %s271, 64
        $region44: #{tpu_custom_call.1} parent=39 // pred_fallthru
          _
        // Predicated region
        $region45: #{tpu_custom_call.1} parent=39 // pred_check
          %p280 = pneg %p84
        $region46: #{tpu_custom_call.1} parent=39 // pred_check_branch
          %282 = sbr.rel (%p280) target = $region48
        $region47: #{tpu_custom_call.1} parent=39 // pred_region
          %284 = dma.done [#allocation9], 1024
        $region48: #{tpu_custom_call.1} parent=39 // pred_fallthru
          _
        // Predicated region
        $region49: #{tpu_custom_call.1} parent=39 // pred_check
          %p285 = pneg %p136
        $region50: #{tpu_custom_call.1} parent=39 // pred_check_branch
          %287 = sbr.rel (%p285) target = $region52
        $region51: #{tpu_custom_call.1} parent=39 // pred_region
          %289 = dma.done [#allocation9], 1024
        $region52: #{tpu_custom_call.1} parent=39 // pred_fallthru
          _
        %s290 = sand.u32 %s45, 1
        %s291 = scalar_lea.sflag [#allocation6], %s290
        %s292 = sand.u32 %s45, 1
        %s293 = smul.addr %s292, 4
        %s294 = scalar_lea.vmem [#allocation5], %s293
        %p295 = pneg %p58
        %p296 = pneg %p55
        %p297 = pneg %p84
        %p298 = pneg %p81
        %p299 = scmp.lt.s32.totalorder %s30, 0
        %s300 = scalar_select %p299, %s30, 0
        %s301 = scalar_lea.vmem %s3, %s300
        %p302 = pneg %p110
        %p303 = pneg %p107
        %p304 = pneg %p136
        %p305 = pneg %p133
        %p306 = pneg %p157
        %p307 = pneg %p154
        %p308 = pneg %p183
        %p309 = pneg %p180
        %s310 = sand.u32 %s170, 1
        %s311 = scalar_lea.sflag [#allocation7], %s310
        %s312 = sand.u32 %s170, 1
        %s313 = smul.addr %s312, 8
        %s314 = scalar_lea.vmem [#allocation11], %s313
        %p315 = scmp.lt.s32.totalorder %s30, 0
        %s316 = scalar_select %p315, %s30, 0
        %s317 = scalar_lea.vmem %s3, %s316
        %s318 = smul.u32 16, %s30
        %p319 = scmp.eq.s32.totalorder %s30, 0
        // Predicated region
        $region53: #{tpu_custom_call.1} parent=39 // pred_check
          %p320 = pneg %p319
        $region54: #{tpu_custom_call.1} parent=39 // pred_check_branch
          %322 = sbr.rel (%p320) target = $region56
        $region55: #{tpu_custom_call.1} parent=39 // pred_region
          %323 = vst [vmem:[#allocation2] sm:$0xff] 0.0
        $region56: #{tpu_custom_call.1} parent=39 // pred_fallthru
          _
        %v324 = vld [vmem:[%s274] sm:$0xf]
        %v325 = vld [vmem:[#allocation8] sm:$0xf]
        %v326 = vld [vmem:[#allocation8 + $0x4] sm:$0xf]
        %v327 = vld [vmem:[#allocation8 + $0x8] sm:$0xf]
        %v328 = vld [vmem:[#allocation8 + $0xc] sm:$0xf]
        %v329 = vld [vmem:[#allocation8 + $0x10] sm:$0xf]
        %v330 = vld [vmem:[#allocation8 + $0x14] sm:$0xf]
        %v331 = vld [vmem:[#allocation8 + $0x18] sm:$0xf]
        %v332 = vld [vmem:[#allocation8 + $0x1c] sm:$0xf]
        %v333 = vld [vmem:[#allocation8 + $0x20] sm:$0xf]
        %v334 = vld [vmem:[#allocation8 + $0x24] sm:$0xf]
        %v335 = vld [vmem:[#allocation8 + $0x28] sm:$0xf]
        %v336 = vld [vmem:[#allocation8 + $0x2c] sm:$0xf]
        %v337 = vld [vmem:[#allocation8 + $0x30] sm:$0xf]
        %v338 = vld [vmem:[#allocation8 + $0x34] sm:$0xf]
        %v339 = vld [vmem:[#allocation8 + $0x38] sm:$0xf]
        %v340 = vld [vmem:[#allocation8 + $0x3c] sm:$0xf]
        %v341 = vld [vmem:[%s317] sm:$0x1]
        %v343 = vperm.slane %v341, 0
        %v361 = vunpack.c.l.b16 %v325
        %v362 = vunpack.c.l.b16 %v326
        %v363 = vunpack.c.l.b16 %v327
        %v364 = vunpack.c.l.b16 %v328
        %v365 = vunpack.c.l.b16 %v329
        %v366 = vunpack.c.l.b16 %v330
        %v367 = vunpack.c.l.b16 %v331
        %v368 = vunpack.c.l.b16 %v332
        %v369 = vunpack.c.l.b16 %v333
        %v370 = vunpack.c.l.b16 %v334
        %v371 = vunpack.c.l.b16 %v335
        %v372 = vunpack.c.l.b16 %v336
        %v373 = vunpack.c.l.b16 %v337
        %v374 = vunpack.c.l.b16 %v338
        %v375 = vunpack.c.l.b16 %v339
        %v376 = vunpack.c.l.b16 %v340
        %v377 = vpack.c.b16 %v362, %v361
        %v378 = vpack.c.b16 %v364, %v363
        %v379 = vpack.c.b16 %v366, %v365
        %v380 = vpack.c.b16 %v368, %v367
        %v381 = vpack.c.b16 %v370, %v369
        %v382 = vpack.c.b16 %v372, %v371
        %v383 = vpack.c.b16 %v374, %v373
        %v384 = vpack.c.b16 %v376, %v375
        %393 = vmatpush.bf16.msra.mxu0 %v384
        %394 = vmatpush.bf16.msra.mxu0 %v383
        %395 = vmatpush.bf16.msra.mxu0 %v382
        %396 = vmatpush.bf16.msra.mxu0 %v381
        %397 = vmatpush.bf16.msra.mxu0 %v380
        %398 = vmatpush.bf16.msra.mxu0 %v379
        %399 = vmatpush.bf16.msra.mxu0 %v378
        %400 = vmatpush.bf16.msra.mxu0 %v377
        %401 = vmatmul.bf16.gmra.mxu0 %v324
        %v402 = vpop.f32.mrf.mxu0
        %v403 = vadd.f32 %v343, %v402
        %v404 = vpop.f32.mrf.mxu0
        %405 = vdwg.mxu0
        %v406 = vmax.f32 %v403, 0.0
        %v407 = vld [vmem:[#allocation2] sm:$0xff]
        %v408 = vpack.c.bf16 %v406, %v406
        %v409 = vld [vmem:[#allocation10] sm:$0xf]
        %v410 = vld [vmem:[#allocation10 + $0x4] sm:$0xf]
        %v411 = vld [vmem:[#allocation10 + $0x8] sm:$0xf]
        %v412 = vld [vmem:[#allocation10 + $0xc] sm:$0xf]
        %v413 = vld [vmem:[#allocation10 + $0x10] sm:$0xf]
        %v414 = vld [vmem:[#allocation10 + $0x14] sm:$0xf]
        %v415 = vld [vmem:[#allocation10 + $0x18] sm:$0xf]
        %v416 = vld [vmem:[#allocation10 + $0x1c] sm:$0xf]
        %v417 = vld [vmem:[#allocation10 + $0x20] sm:$0xf]
        %v418 = vld [vmem:[#allocation10 + $0x24] sm:$0xf]
        %v419 = vld [vmem:[#allocation10 + $0x28] sm:$0xf]
        %v420 = vld [vmem:[#allocation10 + $0x2c] sm:$0xf]
        %v421 = vld [vmem:[#allocation10 + $0x30] sm:$0xf]
        %v422 = vld [vmem:[#allocation10 + $0x34] sm:$0xf]
        %v423 = vld [vmem:[#allocation10 + $0x38] sm:$0xf]
        %v424 = vld [vmem:[#allocation10 + $0x3c] sm:$0xf]
        %v441 = vunpack.c.l.b16 %v409
        %v442 = vunpack.c.l.b16 %v410
        %v443 = vunpack.c.l.b16 %v411
        %v444 = vunpack.c.l.b16 %v412
        %v445 = vunpack.c.l.b16 %v413
        %v446 = vunpack.c.l.b16 %v414
        %v447 = vunpack.c.l.b16 %v415
        %v448 = vunpack.c.l.b16 %v416
        %v449 = vunpack.c.l.b16 %v417
        %v450 = vunpack.c.l.b16 %v418
        %v451 = vunpack.c.l.b16 %v419
        %v452 = vunpack.c.l.b16 %v420
        %v453 = vunpack.c.l.b16 %v421
        %v454 = vunpack.c.l.b16 %v422
        %v455 = vunpack.c.l.b16 %v423
        %v456 = vunpack.c.l.b16 %v424
        %v457 = vpack.c.b16 %v442, %v441
        %v458 = vpack.c.b16 %v444, %v443
        %v459 = vpack.c.b16 %v446, %v445
        %v460 = vpack.c.b16 %v448, %v447
        %v461 = vpack.c.b16 %v450, %v449
        %v462 = vpack.c.b16 %v452, %v451
        %v463 = vpack.c.b16 %v454, %v453
        %v464 = vpack.c.b16 %v456, %v455
        %473 = vmatpush.bf16.msra.mxu0 %v464
        %474 = vmatpush.bf16.msra.mxu0 %v463
        %475 = vmatpush.bf16.msra.mxu0 %v462
        %476 = vmatpush.bf16.msra.mxu0 %v461
        %477 = vmatpush.bf16.msra.mxu0 %v460
        %478 = vmatpush.bf16.msra.mxu0 %v459
        %479 = vmatpush.bf16.msra.mxu0 %v458
        %480 = vmatpush.bf16.msra.mxu0 %v457
        %481 = vmatmul.bf16.gmra.mxu0 %v408
        %v482 = vpop.f32.mrf.mxu0
        %v483 = vadd.f32 0.0, %v482
        %v484 = vpop.f32.mrf.mxu0
        %485 = vdwg.mxu0
        %v486 = vadd.f32 %v407, %v483
        %487 = vst [vmem:[#allocation2] sm:$0xff] %v486
        // Predicated region
        $region57: #{tpu_custom_call.1} parent=39 // pred_check
          %p488 = pneg %p319
        $region58: #{tpu_custom_call.1} parent=39 // pred_check_branch
          %490 = sbr.rel (%p488) target = $region60
        $region59: #{tpu_custom_call.1} parent=39 // pred_region
          %v491 = vld [vmem:[#allocation2] sm:$0xff]
          %v492 = vld [vmem:[%s5] sm:$0x1]
          %v494 = vperm.slane %v492, 0
          %v496 = vadd.f32 %v491, %v494
          %497 = vst [vmem:[%s314] sm:$0xff] %v496
        $region60: #{tpu_custom_call.1} parent=39 // pred_fallthru
          _
        %s498 = sand.u32 %s170, 1
        %s499 = scalar_lea.sflag [#allocation7], %s498
        %s500 = sand.u32 %s170, 1
        %s501 = smul.addr %s500, 8
        %s502 = scalar_lea.vmem [#allocation11], %s501
        // Predicated region
        $region61: #{tpu_custom_call.1} parent=39 // pred_check
          %p503 = pneg %p180
        $region62: #{tpu_custom_call.1} parent=39 // pred_check_branch
          %505 = sbr.rel (%p503) target = $region64
        $region63: #{tpu_custom_call.1} parent=39 // pred_region
          %507 = vsyncadd %s499, 0
          %s508 = smul.addr %s29, 8
          %s509 = scalar_lea.hbm %s6, %s508
          %s511 = sshll.u32 %s502, 4
          %s512 = int_to_ptr.vmem [resolvable:$true] %s511
          %s513 = sshll.u32 %s509, 4
          %s514 = int_to_ptr.hbm [resolvable:$true] %s513
          %516 = dma.vmem_to_hbm [thread:$0]  %s512, 128, %s514, %s499
        $region64: #{tpu_custom_call.1} parent=39 // pred_fallthru
          _
      $region40: #{tpu_custom_call.1} parent=5 // pred_fallthru
        _
      %p517 = scmp.le.s32.totalorder 2, %s20
      // Predicated region
      $region65: #{tpu_custom_call.1} parent=5 // pred_check
        %p518 = pneg %p517
      $region66: #{tpu_custom_call.1} parent=5 // pred_check_branch
        %520 = sbr.rel (%p518) target = $region68
      $region67: #{tpu_custom_call.1} parent=5 // pred_region
        %s521 = ssub.s32 %s20, 2
        // Predicated region
        $region69: #{tpu_custom_call.1} parent=67 // pred_check
          %p522 = pneg %p186
        $region70: #{tpu_custom_call.1} parent=67 // pred_check_branch
          %524 = sbr.rel (%p522) target = $region72
        $region71: #{tpu_custom_call.1} parent=67 // pred_region
          %s525 = sand.u32 %s171, 1
          %s526 = scalar_lea.sflag [#allocation7], %s525
          %s527 = sand.u32 %s171, 1
          %s528 = smul.addr %s527, 8
          %s529 = scalar_lea.vmem [#allocation11], %s528
          %531 = dma.done %s526, 128
        $region72: #{tpu_custom_call.1} parent=67 // pred_fallthru
          _
      $region68: #{tpu_custom_call.1} parent=5 // pred_fallthru
        _
    $region6: #{tpu_custom_call.1} parent=1 // loop_footer
      %s24 = sadd.s32 1, %s20
    $region7: #{tpu_custom_call.1} parent=1 // loop_footer_branch
      %19 = sbr.rel target = $region3
    $region8: #{tpu_custom_call.1} parent=1 // loop_exit
      _
    %532 = vsyncpa [#allocation6], 1
    %s533 = scalar_lea.sflag [#allocation6], 1
    %534 = vsyncpa %s533, 1
    %535 = vsyncpa [#allocation9], 1
    %536 = vsyncpa [#allocation7], 1
    %s537 = scalar_lea.sflag [#allocation7], 1
    %538 = vsyncpa %s537, 1

</llo_original>
